<compile_context>
chip_gen: v7x
topology: tpu7x:2x2x1
jax: 0.10.0
libtpu: 0.0.40
codegen_flags: <defaults>
</compile_context>

<pallas_src>
import functools

import jax
import jax.numpy as jnp
from jax.experimental import pallas as pl
from jax.experimental.pallas import tpu as pltpu


def _round_up(n, m):
    return ((n + m - 1) // m) * m


def _mlp_kernel(x_ref, w1t_ref, b1_ref, w2t_ref, b2_ref, o_ref):
    # x tile: [8, TB] bf16 streamed from HBM; cast once to f32 (v5e VPU has no bf16 math).
    x = x_ref[...].astype(jnp.float32)
    # hidden = relu(W1^T @ x + b1)                           -> [16, TB]
    h = jnp.dot(w1t_ref[...], x, preferred_element_type=jnp.float32)
    h = jnp.maximum(h + b1_ref[...], 0.0)                    # b1 is [16, 1], broadcasts over lanes
    # out = sigmoid(W2^T @ h + b2)                           -> [1, TB] lane-dense store
    z = jnp.dot(w2t_ref[...], h, preferred_element_type=jnp.float32)
    z = z + b2_ref[0, 0]                                     # SMEM scalar bias
    o_ref[...] = jax.nn.sigmoid(z)


@functools.partial(jax.jit, static_argnames=("block_b",))
def diabetes_model_forward(x, w1, b1, w2, b2, *, block_b=8192):
    """x: [B, 8] f32 -> [B, 1] f32. Whole MLP fused into one Pallas kernel."""
    B = x.shape[0]
    # Batch tile: largest multiple of 128 up to block_b. Per-step VMEM is tiny
    # (bf16 x tile = 8*TB*2 B, out tile = TB*4 B), so even double-buffered at
    # TB=8192 it stays far under v5e's 16 MiB scoped default and v7x's 64 MiB VMEM.
    TB = min(block_b, _round_up(B, 128))
    Bp = _round_up(B, TB)
    n_blocks = pl.cdiv(Bp, TB)

    # Transpose to batch-on-lanes, zero-pad batch to a tile multiple, stream bf16.
    x_t = jnp.pad(x, ((0, Bp - B), (0, 0))).T.astype(jnp.bfloat16)    # [8, Bp]
    w1t = w1.T.astype(jnp.float32)                                     # [16, 8]  resident
    b1c = jnp.reshape(b1, (16, 1)).astype(jnp.float32)                 # [16, 1]  resident
    w2t = w2.T.astype(jnp.float32)                                     # [1, 16]  resident
    b2s = jnp.reshape(b2, (1, 1)).astype(jnp.float32)                  # SMEM scalar

    out_t = pl.pallas_call(
        _mlp_kernel,
        out_shape=jax.ShapeDtypeStruct((1, Bp), jnp.float32),
        grid=(n_blocks,),
        in_specs=[
            pl.BlockSpec((8, TB), lambda i: (0, i)),             # x tile, pipelined
            pl.BlockSpec((16, 8), lambda i: (0, 0)),             # W1^T, VMEM-resident
            pl.BlockSpec((16, 1), lambda i: (0, 0)),             # b1,   VMEM-resident
            pl.BlockSpec((1, 16), lambda i: (0, 0)),             # W2^T, VMEM-resident
            pl.BlockSpec(memory_space=pltpu.MemorySpace.SMEM),   # b2 scalar in SMEM
        ],
        out_specs=pl.BlockSpec((1, TB), lambda i: (0, i)),       # lane-dense output
        compiler_params=pltpu.CompilerParams(
            dimension_semantics=("parallel",)),                  # batch axis may split across TCs
    )(x_t, w1t, b1c, w2t, b2s)

    return out_t[:, :B].T                                        # back to [B, 1]


def init_params(key):
    """Deterministic init mirroring nn.Linear's U(-1/sqrt(fan_in), 1/sqrt(fan_in))."""
    k1, k2, k3, k4 = jax.random.split(key, 4)
    bound1 = 1.0 / jnp.sqrt(8.0)
    bound2 = 1.0 / jnp.sqrt(16.0)
    w1 = jax.random.uniform(k1, (8, 16), jnp.float32, -bound1, bound1)   # [in, out]
    b1 = jax.random.uniform(k2, (1, 16), jnp.float32, -bound1, bound1)
    w2 = jax.random.uniform(k3, (16, 1), jnp.float32, -bound2, bound2)
    b2 = jax.random.uniform(k4, (1, 1), jnp.float32, -bound2, bound2)
    return w1, b1, w2, b2


if __name__ == "__main__":
    key = jax.random.PRNGKey(0)
    k_x, k_p, k_x2 = jax.random.split(key, 3)
    w1, b1, w2, b2 = init_params(k_p)

    def ref_fwd(x):
        # Same math as the PyTorch module; x rounded to bf16 to match the
        # kernel's bf16-streamed activations.
        xq = x.astype(jnp.bfloat16).astype(jnp.float32)
        return jax.nn.sigmoid(jnp.maximum(xq @ w1 + b1, 0.0) @ w2 + b2)

    # Small demo batch (single grid step, batch padded to 128 lanes).
    B = 8
    x = jax.random.normal(k_x, (B, 8), jnp.float32)
    out = diabetes_model_forward(x, w1, b1, w2, b2)
    jax.block_until_ready(out)
    assert out.shape == (B, 1)
    assert jnp.allclose(out, ref_fwd(x), atol=2e-3), "mismatch vs reference (B=8)"

    # Ragged batch exercising padding + a multi-step pipelined grid (TB=128, grid=3).
    B2 = 300
    x2 = jax.random.normal(k_x2, (B2, 8), jnp.float32)
    out2 = diabetes_model_forward(x2, w1, b1, w2, b2, block_b=128)
    jax.block_until_ready(out2)
    assert out2.shape == (B2, 1)
    assert jnp.allclose(out2, ref_fwd(x2), atol=2e-3), "mismatch vs reference (B=300)"

    print("KERNEL_OK")
</pallas_src>

<mosaic_0001>
module attributes {stable_mosaic.version = 11 : i64} {
  func.func @_mlp_kernel(%arg0: i32, %arg1: memref<8x128xbf16, #tpu.memory_space<vmem>>, %arg2: memref<16x8xf32, #tpu.memory_space<vmem>>, %arg3: memref<16x1xf32, #tpu.memory_space<vmem>>, %arg4: memref<1x16xf32, #tpu.memory_space<vmem>>, %arg5: memref<1x1xf32, #tpu.memory_space<smem>>, %arg6: memref<1x128xf32, #tpu.memory_space<vmem>>) attributes {dimension_semantics = [#tpu.dimension_semantics<parallel>], iteration_bounds = array<i64: 1>, scalar_prefetch = 0 : i64, scratch_operands = 0 : i64, tpu.core_type = #tpu.core_type<tc>, window_params = [{transform_indices = @transform_0, window_bounds = array<i64: 8, 128>}, {pipeline_mode = #tpu.pipeline_mode<synchronous>, transform_indices = @transform_1, window_bounds = array<i64: 16, 8>}, {pipeline_mode = #tpu.pipeline_mode<synchronous>, transform_indices = @transform_2, window_bounds = array<i64: 16, 1>}, {pipeline_mode = #tpu.pipeline_mode<synchronous>, transform_indices = @transform_3, window_bounds = array<i64: 1, 16>}, {transform_indices = @transform_4, window_bounds = array<i64: 1, 1>}, {transform_indices = @transform_5, window_bounds = array<i64: 1, 128>}]} {
    %c0 = arith.constant 0 : index
    %c0_0 = arith.constant 0 : index
    %0 = vector.load %arg1[%c0, %c0_0] : memref<8x128xbf16, #tpu.memory_space<vmem>>, vector<8x128xbf16>
    %1 = arith.extf %0 : vector<8x128xbf16> to vector<8x128xf32>
    %c0_1 = arith.constant 0 : index
    %c0_2 = arith.constant 0 : index
    %2 = vector.load %arg2[%c0_1, %c0_2] : memref<16x8xf32, #tpu.memory_space<vmem>>, vector<16x8xf32>
    %cst = arith.constant dense<0.000000e+00> : vector<16x128xf32>
    %3 = tpu.matmul %2, %1, %cst {dimension_numbers = #tpu.dot_dimension_numbers<[1], [0], [0], [1], [0, 0, 1, 1], [], []>} : vector<16x8xf32>, vector<8x128xf32>, vector<16x128xf32> -> vector<16x128xf32>
    %c0_3 = arith.constant 0 : index
    %c0_4 = arith.constant 0 : index
    %4 = vector.load %arg3[%c0_3, %c0_4] : memref<16x1xf32, #tpu.memory_space<vmem>>, vector<16x1xf32>
    %5 = vector.broadcast %4 : vector<16x1xf32> to vector<16x128xf32>
    %6 = arith.addf %3, %5 : vector<16x128xf32>
    %cst_5 = arith.constant 0.000000e+00 : f32
    %7 = vector.broadcast %cst_5 : f32 to vector<16x128xf32>
    %8 = arith.maximumf %6, %7 : vector<16x128xf32>
    %c0_6 = arith.constant 0 : index
    %c0_7 = arith.constant 0 : index
    %9 = vector.load %arg4[%c0_6, %c0_7] : memref<1x16xf32, #tpu.memory_space<vmem>>, vector<1x16xf32>
    %cst_8 = arith.constant dense<0.000000e+00> : vector<1x128xf32>
    %10 = tpu.matmul %9, %8, %cst_8 {dimension_numbers = #tpu.dot_dimension_numbers<[1], [0], [0], [1], [0, 0, 1, 1], [], []>} : vector<1x16xf32>, vector<16x128xf32>, vector<1x128xf32> -> vector<1x128xf32>
    %c0_9 = arith.constant 0 : index
    %c0_10 = arith.constant 0 : index
    %11 = memref.load %arg5[%c0_9, %c0_10] : memref<1x1xf32, #tpu.memory_space<smem>>
    %12 = vector.broadcast %11 : f32 to vector<1x128xf32>
    %13 = arith.addf %10, %12 : vector<1x128xf32>
    %14 = arith.negf %13 : vector<1x128xf32>
    %15 = math.exp %14 : vector<1x128xf32>
    %cst_11 = arith.constant 1.000000e+00 : f32
    %16 = vector.broadcast %cst_11 : f32 to vector<1x128xf32>
    %17 = arith.addf %16, %15 : vector<1x128xf32>
    %18 = arith.divf %16, %17 : vector<1x128xf32>
    %c0_12 = arith.constant 0 : index
    %c0_13 = arith.constant 0 : index
    %19 = vector.load %arg6[%c0_12, %c0_13] : memref<1x128xf32, #tpu.memory_space<vmem>>, vector<1x128xf32>
    tpu.vector_store %arg6[%c0_12, %c0_13], %18 {strides = array<i32>} : memref<1x128xf32, #tpu.memory_space<vmem>>, vector<1x128xf32>,
    return
  }
  func.func @transform_0(%arg0: i32) -> (i32, i32) {
    %c0_i32 = arith.constant 0 : i32
    %c0_i32_0 = arith.constant 0 : i32
    return %c0_i32, %arg0 : i32, i32
  }
  func.func @transform_1(%arg0: i32) -> (i32, i32) {
    %c0_i32 = arith.constant 0 : i32
    %c0_i32_0 = arith.constant 0 : i32
    %c0_i32_1 = arith.constant 0 : i32
    return %c0_i32, %c0_i32_0 : i32, i32
  }
  func.func @transform_2(%arg0: i32) -> (i32, i32) {
    %c0_i32 = arith.constant 0 : i32
    %c0_i32_0 = arith.constant 0 : i32
    %c0_i32_1 = arith.constant 0 : i32
    return %c0_i32, %c0_i32_0 : i32, i32
  }
  func.func @transform_3(%arg0: i32) -> (i32, i32) {
    %c0_i32 = arith.constant 0 : i32
    %c0_i32_0 = arith.constant 0 : i32
    %c0_i32_1 = arith.constant 0 : i32
    return %c0_i32, %c0_i32_0 : i32, i32
  }
  func.func @transform_4(%arg0: i32) -> (i32, i32) {
    %c0_i32 = arith.constant 0 : i32
    %c0_i32_0 = arith.constant 0 : i32
    %c0_i32_1 = arith.constant 0 : i32
    return %c0_i32, %c0_i32_0 : i32, i32
  }
  func.func @transform_5(%arg0: i32) -> (i32, i32) {
    %c0_i32 = arith.constant 0 : i32
    %c0_i32_0 = arith.constant 0 : i32
    return %c0_i32, %arg0 : i32, i32
  }
}

</mosaic_0001>

<llo_original>
// kernel: diabetes_model_forward.1
$region0: #{diabetes_model_forward.1}
  #allocation0 [shape = 'u32[]', space=smem, size = 0x4, offset = 0x4, fixed_abs, tag = 'smem constant byte address 0x4 - core index']
  #allocation1 [shape = 'u32[144,128]{1,0:T(1,128)}', space=vmem, size = 0x12000, scoped, tag = 'internal scratch']
  #allocation2 [shape = 'f32[1,1]{1,0:T(1,128)S(6)}', space=smem, size = 0x200, scoped, tag = 'scoped memory for diabetes_model_forward.1']
  %s0 = inlined_call_operand.vmem [shape: bf16[8,128], index: 0, kind: input, shape index: {}]
  %s1 = inlined_call_operand.vmem [shape: f32[16,8], index: 1, kind: input, shape index: {}]
  %s2 = inlined_call_operand.vmem [shape: f32[16,1], index: 2, kind: input, shape index: {}]
  %s3 = inlined_call_operand.vmem [shape: f32[1,16], index: 3, kind: input, shape index: {}]
  %s4 = inlined_call_operand.<no memory space> [shape: f32[1,1], index: 4, kind: input, shape index: {}]
  %s5 = inlined_call_operand.vmem [shape: f32[1,128], index: 5, kind: output, shape index: {}]
  %s6 = sld [smem:[#allocation0]]
  $region30: #{diabetes_model_forward.1} parent=0
    _
  %s8 = ssub.s32 1, %s6
  %s9 = scalar_select 0, %s8, %s6
  %10 = sst [smem:[#allocation2]] %s4
  // Predicated region
  $region2: #{diabetes_model_forward.1} parent=0 // pred_check
    _
  $region3: #{diabetes_model_forward.1} parent=0 // pred_check_branch
    %12 = sbr.rel (0) target = $region5
  $region4: #{diabetes_model_forward.1} parent=0 // pred_region
    _
  $region5: #{diabetes_model_forward.1} parent=0 // pred_fallthru
    _
  // Predicated region
  $region6: #{diabetes_model_forward.1} parent=0 // pred_check
    _
  $region7: #{diabetes_model_forward.1} parent=0 // pred_check_branch
    %14 = sbr.rel (0) target = $region9
  $region8: #{diabetes_model_forward.1} parent=0 // pred_region
    _
  $region9: #{diabetes_model_forward.1} parent=0 // pred_fallthru
    _
  // Predicated region
  $region10: #{diabetes_model_forward.1} parent=0 // pred_check
    _
  $region11: #{diabetes_model_forward.1} parent=0 // pred_check_branch
    %16 = sbr.rel (0) target = $region13
  $region12: #{diabetes_model_forward.1} parent=0 // pred_region
    _
  $region13: #{diabetes_model_forward.1} parent=0 // pred_fallthru
    _
  // Predicated region
  $region14: #{diabetes_model_forward.1} parent=0 // pred_check
    _
  $region15: #{diabetes_model_forward.1} parent=0 // pred_check_branch
    %18 = sbr.rel (0) target = $region17
  $region16: #{diabetes_model_forward.1} parent=0 // pred_region
    _
  $region17: #{diabetes_model_forward.1} parent=0 // pred_fallthru
    _
  // Predicated region
  $region18: #{diabetes_model_forward.1} parent=0 // pred_check
    _
  $region19: #{diabetes_model_forward.1} parent=0 // pred_check_branch
    %20 = sbr.rel (0) target = $region21
  $region20: #{diabetes_model_forward.1} parent=0 // pred_region
    _
  $region21: #{diabetes_model_forward.1} parent=0 // pred_fallthru
    _
  %v21 = vld [vmem:[%s0] sm:$0xf]
  %v22 = vunpack.c.l.bf16 %v21
  %v23 = vld [vmem:[%s1] sm:$0xff]
  %v24 = vld [vmem:[%s1 + $0x8] sm:$0xff]
  %v25 = vld [vmem:[%s2] sm:$0xff]
  %v26 = vld [vmem:[%s2 + $0x8] sm:$0xff]
  %28 = vset.pattern.permute.xlu0 0
  %29 = vperm.xlu0 %28, %v25
  %v30 = vpop.permute.xlu0 %29
  %33 = vset.pattern.permute.xlu0 0
  %34 = vperm.xlu0 %33, %v26
  %v35 = vpop.permute.xlu0 %34
  %vm37 = vcmask 64512
  %v39 = vsel %vm37, %v23, 0
  %v42 = vsel %vm37, %v24, 0
  %44 = vmatprep.subr.mxu0 0.0
  %45 = vmatpush1.msra.mxu0 %v22
  %46 = vmatprep.subr.mxu0 0.0
  %47 = vmatpush1.msra.mxu0 0.0
  %48 = vmatprep.subr.mxu0 0.0
  %49 = vmatpush1.msra.mxu0 0.0
  %50 = vmatprep.subr.mxu0 0.0
  %51 = vmatpush1.msra.mxu0 0.0
  %52 = vmatprep.subr.mxu0 0.0
  %53 = vmatpush1.msra.mxu0 0.0
  %54 = vmatprep.subr.mxu0 0.0
  %55 = vmatpush1.msra.mxu0 0.0
  %56 = vmatprep.subr.mxu0 0.0
  %57 = vmatpush1.msra.mxu0 0.0
  %58 = vmatprep.subr.mxu0 0.0
  %59 = vmatpush1.msra.mxu0 0.0
  %60 = vmatprep.subr.mxu0 0.0
  %61 = vmatpush1.msra.mxu0 0.0
  %62 = vmatprep.subr.mxu0 0.0
  %63 = vmatpush1.msra.mxu0 0.0
  %64 = vmatprep.subr.mxu0 0.0
  %65 = vmatpush1.msra.mxu0 0.0
  %66 = vmatprep.subr.mxu0 0.0
  %67 = vmatpush1.msra.mxu0 0.0
  %68 = vmatprep.subr.mxu0 0.0
  %69 = vmatpush1.msra.mxu0 0.0
  %70 = vmatprep.subr.mxu0 0.0
  %71 = vmatpush1.msra.mxu0 0.0
  %72 = vmatprep.subr.mxu0 0.0
  %73 = vmatpush1.msra.mxu0 0.0
  %74 = vmatprep.subr.mxu0 0.0
  %75 = vmatpush1.msra.mxu0 0.0
  %76 = vmatprep.subr.mxu0 0.0
  %77 = vmatpush1.msra.mxu0 0.0
  %78 = vmatprep.subr.mxu0 0.0
  %79 = vmatpush1.msra.mxu0 0.0
  %80 = vmatprep.subr.mxu0 0.0
  %81 = vmatpush1.msra.mxu0 0.0
  %82 = vmatprep.subr.mxu0 0.0
  %83 = vmatpush1.msra.mxu0 0.0
  %84 = vmatprep.subr.mxu0 0.0
  %85 = vmatpush1.msra.mxu0 0.0
  %86 = vmatprep.subr.mxu0 0.0
  %87 = vmatpush1.msra.mxu0 0.0
  %88 = vmatprep.subr.mxu0 0.0
  %89 = vmatpush1.msra.mxu0 0.0
  %90 = vmatprep.subr.mxu0 0.0
  %91 = vmatpush1.msra.mxu0 0.0
  %92 = vmatprep.subr.mxu0 0.0
  %93 = vmatpush1.msra.mxu0 0.0
  %94 = vmatprep.subr.mxu0 0.0
  %95 = vmatpush1.msra.mxu0 0.0
  %96 = vmatprep.subr.mxu0 0.0
  %97 = vmatpush1.msra.mxu0 0.0
  %98 = vmatprep.subr.mxu0 0.0
  %99 = vmatpush1.msra.mxu0 0.0
  %100 = vmatprep.subr.mxu0 0.0
  %101 = vmatpush1.msra.mxu0 0.0
  %102 = vmatprep.subr.mxu0 0.0
  %103 = vmatpush1.msra.mxu0 0.0
  %104 = vmatprep.subr.mxu0 0.0
  %105 = vmatpush1.msra.mxu0 0.0
  %106 = vmatprep.subr.mxu0 0.0
  %107 = vmatpush1.msra.mxu0 0.0
  %108 = vmatprep.mubr.f32.mxu0 0.0
  %109 = vmatmul.mubr.f32.gmra.mrb[0].mxu0 %v39
  %v110 = vpop.f32.mrb[0].mxu0
  %v111 = vadd.f32 %v30, %v110
  %v112 = vpop.f32.mrb[0].mxu0
  %113 = vmatprep.mubr.f32.mxu0 0.0
  %114 = vmatmul.mubr.f32.gmra.mrb[0].mxu0 %v42
  %v115 = vpop.f32.mrb[0].mxu0
  %v116 = vadd.f32 %v35, %v115
  %v117 = vpop.f32.mrb[0].mxu0
  %118 = vdwg.mxu0
  %v119 = vmax.f32 %v111, 0.0
  %v120 = vmax.f32 %v116, 0.0
  %v121 = vld [vmem:[%s3] sm:$0x1]
  %s122 = sld [smem:[#allocation2]]
  %v123 = vstv %s122
  %vm124 = vcmask 130048
  %v126 = vsel %vm124, %v121, 0
  %128 = vmatprep.subr.mxu0 0.0
  %129 = vmatpush1.msra.mxu0 %v119
  %130 = vmatprep.subr.mxu0 0.0
  %131 = vmatpush1.msra.mxu0 %v120
  %132 = vmatprep.subr.mxu0 0.0
  %133 = vmatpush1.msra.mxu0 0.0
  %134 = vmatprep.subr.mxu0 0.0
  %135 = vmatpush1.msra.mxu0 0.0
  %136 = vmatprep.subr.mxu0 0.0
  %137 = vmatpush1.msra.mxu0 0.0
  %138 = vmatprep.subr.mxu0 0.0
  %139 = vmatpush1.msra.mxu0 0.0
  %140 = vmatprep.subr.mxu0 0.0
  %141 = vmatpush1.msra.mxu0 0.0
  %142 = vmatprep.subr.mxu0 0.0
  %143 = vmatpush1.msra.mxu0 0.0
  %144 = vmatprep.subr.mxu0 0.0
  %145 = vmatpush1.msra.mxu0 0.0
  %146 = vmatprep.subr.mxu0 0.0
  %147 = vmatpush1.msra.mxu0 0.0
  %148 = vmatprep.subr.mxu0 0.0
  %149 = vmatpush1.msra.mxu0 0.0
  %150 = vmatprep.subr.mxu0 0.0
  %151 = vmatpush1.msra.mxu0 0.0
  %152 = vmatprep.subr.mxu0 0.0
  %153 = vmatpush1.msra.mxu0 0.0
  %154 = vmatprep.subr.mxu0 0.0
  %155 = vmatpush1.msra.mxu0 0.0
  %156 = vmatprep.subr.mxu0 0.0
  %157 = vmatpush1.msra.mxu0 0.0
  %158 = vmatprep.subr.mxu0 0.0
  %159 = vmatpush1.msra.mxu0 0.0
  %160 = vmatprep.subr.mxu0 0.0
  %161 = vmatpush1.msra.mxu0 0.0
  %162 = vmatprep.subr.mxu0 0.0
  %163 = vmatpush1.msra.mxu0 0.0
  %164 = vmatprep.subr.mxu0 0.0
  %165 = vmatpush1.msra.mxu0 0.0
  %166 = vmatprep.subr.mxu0 0.0
  %167 = vmatpush1.msra.mxu0 0.0
  %168 = vmatprep.subr.mxu0 0.0
  %169 = vmatpush1.msra.mxu0 0.0
  %170 = vmatprep.subr.mxu0 0.0
  %171 = vmatpush1.msra.mxu0 0.0
  %172 = vmatprep.subr.mxu0 0.0
  %173 = vmatpush1.msra.mxu0 0.0
  %174 = vmatprep.subr.mxu0 0.0
  %175 = vmatpush1.msra.mxu0 0.0
  %176 = vmatprep.subr.mxu0 0.0
  %177 = vmatpush1.msra.mxu0 0.0
  %178 = vmatprep.subr.mxu0 0.0
  %179 = vmatpush1.msra.mxu0 0.0
  %180 = vmatprep.subr.mxu0 0.0
  %181 = vmatpush1.msra.mxu0 0.0
  %182 = vmatprep.subr.mxu0 0.0
  %183 = vmatpush1.msra.mxu0 0.0
  %184 = vmatprep.subr.mxu0 0.0
  %185 = vmatpush1.msra.mxu0 0.0
  %186 = vmatprep.subr.mxu0 0.0
  %187 = vmatpush1.msra.mxu0 0.0
  %188 = vmatprep.subr.mxu0 0.0
  %189 = vmatpush1.msra.mxu0 0.0
  %190 = vmatprep.subr.mxu0 0.0
  %191 = vmatpush1.msra.mxu0 0.0
  %192 = vmatprep.mubr.f32.mxu0 0.0
  %193 = vmatmul.mubr.f32.gmra.mrb[0].mxu0 %v126
  %v194 = vpop.f32.mrb[0].mxu0
  %v195 = vadd.f32 %v123, %v194
  %v196 = vpop.f32.mrb[0].mxu0
  %197 = vdwg.mxu0
  %v198 = vxor.u32 %v195, 2147483648
  %v199 = vmul.f32 %v198, 1.442695
  %v200 = vpow.pop %v199
  %v201 = vadd.f32 %v200, 1.0
  %v202 = vrcp.pop %v201
  %v203 = vmul.f32 1.0, %v202
  %204 = vst [vmem:[%s5] sm:$0x1] %v203
  // Predicated region
  $region22: #{diabetes_model_forward.1} parent=0 // pred_check
    _
  $region23: #{diabetes_model_forward.1} parent=0 // pred_check_branch
    %206 = sbr.rel (0) target = $region25
  $region24: #{diabetes_model_forward.1} parent=0 // pred_region
    _
  $region25: #{diabetes_model_forward.1} parent=0 // pred_fallthru
    _
  // Predicated region
  $region26: #{diabetes_model_forward.1} parent=0 // pred_check
    _
  $region27: #{diabetes_model_forward.1} parent=0 // pred_check_branch
    %208 = sbr.rel (0) target = $region29
  $region28: #{diabetes_model_forward.1} parent=0 // pred_region
    _
  $region29: #{diabetes_model_forward.1} parent=0 // pred_fallthru
    _

</llo_original>
